<compile_context>
chip_gen: v5e
topology: v5e:2x2
jax: 0.10.0
libtpu: 0.0.40
codegen_flags: <defaults>
</compile_context>

<pallas_src>
import jax
import jax.numpy as jnp
from jax.experimental import pallas as pl
from jax.experimental.pallas import tpu as pltpu


_LANES = 128
_SUBLANE_PACK = {4: 8, 2: 16, 1: 32}       # itemsize -> sublane packing
_TILE_BYTES = 4 * 1024 * 1024              # ~86% HBM roofline plateau per tile
_SPLIT_BYTES = 2 * 1024 * 1024             # above this, force >=2 grid steps (v7x 2-TC)
_VMEM_LIMIT = 32 * 1024 * 1024             # 2x dbl-buffered 4 MiB tiles; <= v7x 64 MiB/TC


def _hsigmoid_kernel(x_ref, o_ref):
    # relu6(x + 3) / 6 == clamp(x + 3, 0, 6) * (1/6).
    # Compute in f32 regardless of input dtype: kernel is HBM-bound with huge
    # VPU slack, so this is free and collapses bf16 roundings into one.
    x = x_ref[...].astype(jnp.float32)
    o_ref[...] = (jnp.clip(x + 3.0, 0.0, 6.0) * (1.0 / 6.0)).astype(o_ref.dtype)


def _round_up(v, m):
    return -(-v // m) * m


def _pallas_elementwise(x, block_shape, index_map, grid, donate):
    kwargs = {}
    if donate:
        # Caller must also donate the buffer via jax.jit(donate_argnums=...)
        # to avoid a defensive XLA copy; removes the second n-byte HBM alloc.
        kwargs["input_output_aliases"] = {0: 0}
    return pl.pallas_call(
        _hsigmoid_kernel,
        out_shape=jax.ShapeDtypeStruct(x.shape, x.dtype),
        grid_spec=pltpu.PrefetchScalarGridSpec(
            num_scalar_prefetch=0,
            grid=grid,
            in_specs=[pl.BlockSpec(block_shape, index_map)],
            out_specs=pl.BlockSpec(block_shape, index_map),
        ),
        compiler_params=pltpu.CompilerParams(
            dimension_semantics=("parallel",),
            vmem_limit_bytes=_VMEM_LIMIT,
        ),
        **kwargs,
    )(x)


def _hsigmoid_2d(x2d, tile_bytes, donate):
    """Fast path: lane-dense (rows, 128) slab, contiguous (block_rows, 128) tiles."""
    rows, lanes = x2d.shape
    itemsize = jnp.dtype(x2d.dtype).itemsize
    pack = _SUBLANE_PACK.get(itemsize, 8)

    # Byte-sized tile: same ~tile_bytes for f32 / bf16 / int8.
    block_rows = max(pack, (tile_bytes // (lanes * itemsize)) // pack * pack)

    # v7x megacore: if the slab is worth splitting, guarantee >= 2 grid steps
    # (prefer an even count) so "parallel" shards across both TensorCores.
    slab_bytes = rows * lanes * itemsize
    if slab_bytes > _SPLIT_BYTES:
        block_rows = min(block_rows, _round_up(pl.cdiv(rows, 2), pack))
        steps = pl.cdiv(rows, block_rows)
        if steps > 1 and steps % 2 == 1:
            block_rows = max(pack, _round_up(pl.cdiv(rows, steps + 1), pack))
    block_rows = min(block_rows, rows)   # tiny slab -> single full-extent block

    grid = (pl.cdiv(rows, block_rows),)
    return _pallas_elementwise(x2d, (block_rows, lanes), lambda i: (i, 0), grid, donate)


def _hsigmoid_1d(x_flat, tile_bytes, donate):
    """Fallback for flat sizes not divisible by 128: 1-D blocks, partial last
    block masked by Pallas — no pad copy, no trailing-slice copy."""
    (n,) = x_flat.shape
    itemsize = jnp.dtype(x_flat.dtype).itemsize
    vreg = _SUBLANE_PACK.get(itemsize, 8) * _LANES   # snap blocks to whole vregs

    block = max(vreg, (tile_bytes // itemsize) // vreg * vreg)
    if n * itemsize > _SPLIT_BYTES:                  # keep both v7x TCs busy
        block = min(block, _round_up(pl.cdiv(n, 2), vreg))
    if block >= n:
        block = n                                    # full extent: always legal

    grid = (pl.cdiv(n, block),)
    return _pallas_elementwise(x_flat, (block,), lambda i: (i,), grid, donate)


def hsigmoid(x, *, tile_bytes=_TILE_BYTES, donate=False):
    """Elementwise hard-sigmoid: relu6(x + 3) / 6.  Any shape, float dtype."""
    orig_shape = x.shape
    n = x.size
    if n == 0:
        return x

    if n % _LANES == 0:
        # Free metadata reshape to a lane-dense slab; no pad, no slice.
        out = _hsigmoid_2d(x.reshape(n // _LANES, _LANES), tile_bytes, donate)
    else:
        # Rare path: run directly on the flat array; Pallas masks the partial
        # last block (single HBM read + write, same as the fast path).
        out = _hsigmoid_1d(x.reshape(n), tile_bytes, donate)
    return out.reshape(orig_shape)


if __name__ == "__main__":
    key = jax.random.PRNGKey(0)

    # f32 NCHW activation consistent with MobileNetV3 (fast 2-D path).
    x = jax.random.normal(key, (2, 4, 16, 16), dtype=jnp.float32) * 4.0
    y = jax.block_until_ready(hsigmoid(x))
    y_ref = jnp.clip(x + 3.0, 0.0, 6.0) / 6.0
    assert y.shape == x.shape and y.dtype == x.dtype
    assert jnp.allclose(y, y_ref, atol=1e-6, rtol=1e-6)

    # bf16 reuse (in-kernel f32 compute, single rounding at the store).
    xb = x.astype(jnp.bfloat16)
    yb = jax.block_until_ready(hsigmoid(xb))
    yb_ref = jnp.clip(xb.astype(jnp.float32) + 3.0, 0.0, 6.0) / 6.0
    assert yb.dtype == jnp.bfloat16
    assert jnp.allclose(yb.astype(jnp.float32), yb_ref, atol=1e-2, rtol=1e-2)

    # Non-128-divisible flat size (1-D fallback, no pad / no slice).
    x3 = jax.random.normal(jax.random.PRNGKey(1), (2, 3, 20, 24), jnp.float32)
    y3 = jax.block_until_ready(hsigmoid(x3))
    y3_ref = jnp.clip(x3 + 3.0, 0.0, 6.0) / 6.0
    assert jnp.allclose(y3, y3_ref, atol=1e-6, rtol=1e-6)

    # Multi-step grid with a partial last row-block (forced small tile).
    x4 = jax.random.normal(jax.random.PRNGKey(2), (2, 4, 5, 128), jnp.float32)
    y4 = jax.block_until_ready(hsigmoid(x4, tile_bytes=16 * 1024))
    y4_ref = jnp.clip(x4 + 3.0, 0.0, 6.0) / 6.0
    assert jnp.allclose(y4, y4_ref, atol=1e-6, rtol=1e-6)

    print("KERNEL_OK")
</pallas_src>

<mosaic_0001>
module attributes {stable_mosaic.version = 11 : i64} {
  func.func @_hsigmoid_kernel(%arg0: i32, %arg1: memref<16x128xf32, #tpu.memory_space<vmem>>, %arg2: memref<16x128xf32, #tpu.memory_space<vmem>>) attributes {dimension_semantics = [#tpu.dimension_semantics<parallel>], iteration_bounds = array<i64: 1>, scalar_prefetch = 0 : i64, scratch_operands = 0 : i64, tpu.core_type = #tpu.core_type<tc>, window_params = [{transform_indices = @transform_0, window_bounds = array<i64: 16, 128>}, {transform_indices = @transform_1, window_bounds = array<i64: 16, 128>}]} {
    %c0 = arith.constant 0 : index
    %c0_0 = arith.constant 0 : index
    %0 = vector.load %arg1[%c0, %c0_0] : memref<16x128xf32, #tpu.memory_space<vmem>>, vector<16x128xf32>
    %cst = arith.constant 3.000000e+00 : f32
    %1 = vector.broadcast %cst : f32 to vector<16x128xf32>
    %2 = arith.addf %0, %1 : vector<16x128xf32>
    %cst_1 = arith.constant 0.000000e+00 : f32
    %cst_2 = arith.constant 6.000000e+00 : f32
    %3 = vector.broadcast %cst_1 : f32 to vector<16x128xf32>
    %4 = arith.maximumf %3, %2 : vector<16x128xf32>
    %5 = vector.broadcast %cst_2 : f32 to vector<16x128xf32>
    %6 = arith.minimumf %5, %4 : vector<16x128xf32>
    %cst_3 = arith.constant 0.166666672 : f32
    %7 = vector.broadcast %cst_3 : f32 to vector<16x128xf32>
    %8 = arith.mulf %6, %7 : vector<16x128xf32>
    %c0_4 = arith.constant 0 : index
    %c0_5 = arith.constant 0 : index
    %9 = vector.load %arg2[%c0_4, %c0_5] : memref<16x128xf32, #tpu.memory_space<vmem>>, vector<16x128xf32>
    tpu.vector_store %arg2[%c0_4, %c0_5], %8 {strides = array<i32>} : memref<16x128xf32, #tpu.memory_space<vmem>>, vector<16x128xf32>,
    return
  }
  func.func @transform_0(%arg0: i32) -> (i32, i32) {
    %c0_i32 = arith.constant 0 : i32
    %c0_i32_0 = arith.constant 0 : i32
    return %arg0, %c0_i32 : i32, i32
  }
  func.func @transform_1(%arg0: i32) -> (i32, i32) {
    %c0_i32 = arith.constant 0 : i32
    %c0_i32_0 = arith.constant 0 : i32
    return %arg0, %c0_i32 : i32, i32
  }
}

</mosaic_0001>

<llo_original>
// kernel: tpu_custom_call.1
$region0: #{tpu_custom_call.1}
  #allocation0 [shape = 'u32[]', space=smem, size = 0x4, offset = 0x4, fixed_abs, tag = 'smem constant byte address 0x4 - core index']
  #allocation1 [shape = 'u32[72,128]{1,0:T(1,128)}', space=vmem, size = 0x9000, scoped, tag = 'internal scratch']
  %s0 = inlined_call_operand.hbm [shape: f32[16,128], index: 0, kind: input, shape index: {}]
  %s1 = inlined_call_operand.hbm [shape: f32[16,128], index: 1, kind: output, shape index: {}]
  %s2 = sld [smem:[#allocation0]]
  $region18: #{tpu_custom_call.1} parent=0
    _
  %s4 = ssub.s32 1, %s2
  %s5 = scalar_select 0, %s4, %s2
  $region1: #{tpu_custom_call.1} parent=0
    #allocation2 [shape = 'u8[8192]{0}', space=vmem, size = 0x2000, scoped, tag = 'input window, operand 0, single buffered']
    #allocation3 [shape = 's32[1]{0}', space=sflag, size = 0x4, scoped, tag = 'scoped memory for tpu_custom_call.1']
    #allocation4 [shape = 's32[1]{0}', space=sflag, size = 0x4, scoped, tag = 'scoped memory for tpu_custom_call.1']
    #allocation5 [shape = 'u8[8192]{0}', space=vmem, size = 0x2000, scoped, tag = 'output window, operand 0, single buffered']
    %6 = vsyncpa [#allocation3], 0
    %7 = vsyncpa [#allocation4], 0
    // Predicated region
    $region2: #{tpu_custom_call.1} parent=1 // pred_check
      _
    $region3: #{tpu_custom_call.1} parent=1 // pred_check_branch
      %9 = sbr.rel (0) target = $region5
    $region4: #{tpu_custom_call.1} parent=1 // pred_region
      %11 = vsyncadd [#allocation3], 0
      %s12 = sshll.u32 %s0, 4
      %s13 = int_to_ptr.hbm [resolvable:$true] %s12
      %s14 = sshll.u32 [#allocation2], 4
      %s15 = int_to_ptr.vmem [resolvable:$true] %s14
      %20 = dma.hbm_to_vmem [thread:$0]  %s13, 256, %s15, [#allocation3], 128, 128, 8
    $region5: #{tpu_custom_call.1} parent=1 // pred_fallthru
      _
    // Predicated region
    $region6: #{tpu_custom_call.1} parent=1 // pred_check
      _
    $region7: #{tpu_custom_call.1} parent=1 // pred_check_branch
      %22 = sbr.rel (0) target = $region9
    $region8: #{tpu_custom_call.1} parent=1 // pred_region
      %24 = dma.done [#allocation3], 256
    $region9: #{tpu_custom_call.1} parent=1 // pred_fallthru
      _
    %v25 = vld [vmem:[#allocation2] sm:$0xff]
    %v26 = vld [vmem:[#allocation2 + $0x8] sm:$0xff]
    %v27 = vadd.f32 %v25, 3.0
    %v28 = vadd.f32 %v26, 3.0
    %v29 = vmax.f32 %v27, 0.0
    %v30 = vmax.f32 %v28, 0.0
    %v31 = vmin.f32 %v29, 6.0
    %v32 = vmin.f32 %v30, 6.0
    %v33 = vmul.f32 %v31, 0.16666667
    %v34 = vmul.f32 %v32, 0.16666667
    %35 = vst [vmem:[#allocation5] sm:$0xff] %v33
    %36 = vst [vmem:[#allocation5 + $0x8] sm:$0xff] %v34
    // Predicated region
    $region10: #{tpu_custom_call.1} parent=1 // pred_check
      _
    $region11: #{tpu_custom_call.1} parent=1 // pred_check_branch
      %38 = sbr.rel (0) target = $region13
    $region12: #{tpu_custom_call.1} parent=1 // pred_region
      %40 = vsyncadd [#allocation4], 0
      %s41 = sshll.u32 [#allocation5], 4
      %s42 = int_to_ptr.vmem [resolvable:$true] %s41
      %s43 = sshll.u32 %s1, 4
      %s44 = int_to_ptr.hbm [resolvable:$true] %s43
      %49 = dma.vmem_to_hbm [thread:$0]  %s42, 256, %s44, [#allocation4], 128, 128, 8
    $region13: #{tpu_custom_call.1} parent=1 // pred_fallthru
      _
    // Predicated region
    $region14: #{tpu_custom_call.1} parent=1 // pred_check
      _
    $region15: #{tpu_custom_call.1} parent=1 // pred_check_branch
      %51 = sbr.rel (0) target = $region17
    $region16: #{tpu_custom_call.1} parent=1 // pred_region
      %53 = dma.done [#allocation4], 256
    $region17: #{tpu_custom_call.1} parent=1 // pred_fallthru
      _
    %54 = vsyncpa [#allocation3], 1
    %55 = vsyncpa [#allocation4], 1

</llo_original>
